<compile_context>
chip_gen: v7x
topology: tpu7x:2x2x1
jax: 0.10.0
libtpu: 0.0.40
codegen_flags: <defaults>
</compile_context>

<pallas_src>
import jax
import jax.numpy as jnp
from jax import lax
from jax.experimental import pallas as pl
from jax.experimental.pallas import tpu as pltpu
import numpy as np


def _graph_softmax_agg_kernel(score_ref, info_ref, out_ref):
    # score_ref : (TR, N) VMEM   pre-contracted scores (x @ w), native dtype
    # info_ref  : (TR, N) VMEM   native dtype
    # out_ref   : (TR, 1) VMEM   f32
    i = pl.program_id(0)
    tr, n = score_ref.shape

    # Upcast in-kernel: inputs stream in their native dtype (e.g. bf16).
    score = score_ref[...].astype(jnp.float32)                    # (TR, N)

    # fill_diagonal_(-inf): global row index of local row r is r + i*TR.
    col = lax.broadcasted_iota(jnp.int32, (tr, n), 1)              # (TR, N)
    row = lax.broadcasted_iota(jnp.int32, (tr, 1), 0) + i * tr     # (TR, 1)
    score = jnp.where(col == row, jnp.float32(-jnp.inf), score)

    # Numerically-stable softmax, normalization deferred (attn never built).
    m = jnp.max(score, axis=-1, keepdims=True)                     # (TR, 1)
    e = jnp.exp(score - m)                                         # (TR, N)
    s = jnp.sum(e, axis=-1, keepdims=True)                         # (TR, 1)
    num = jnp.sum(e * info_ref[...].astype(jnp.float32),
                  axis=-1, keepdims=True)                          # (TR, 1)

    # Per-row reciprocal on the EUP slot + one Newton step (~f32 accuracy).
    inv = pl.reciprocal(s, approx=True)
    inv = inv * (2.0 - s * inv)

    out_ref[...] = num * inv                                       # (TR, 1)


def _vmem_budgets():
    """Generation-aware (tile_budget_bytes, vmem_limit_bytes, max_row_block)."""
    try:
        cap = pltpu.get_tpu_info().vmem_capacity_bytes
    except Exception:
        cap = 64 * 1024 * 1024                 # conservative (v7x-sized) fallback
    if cap >= 100 * 1024 * 1024:               # v5e / v6e: 128 MiB physical VMEM
        return 48 * 1024 * 1024, 64 * 1024 * 1024, 1024
    # v7x: 64 MiB physical VMEM per TensorCore -> keep headroom.
    return 24 * 1024 * 1024, 32 * 1024 * 1024, 512


def _pick_row_tile(n, score_itemsize, info_itemsize, budget, tr_cap):
    """Largest row block that keeps the per-step VMEM footprint under budget."""
    if n <= 8:
        return n
    # per step ~ 2 (double-buffer) * (score + info) * TR*N streamed inputs
    #          + ~5 f32 (TR, N) temps (masked score, iota, e, e*info, ...)
    per_row = 2 * (score_itemsize + info_itemsize) * n + 20 * n
    tr = max(8, int(budget // per_row))
    tr = min(tr, tr_cap, n)
    tr = max(8, (tr // 8) * 8)                 # sublane dim multiple of 8
    return int(tr)


def graph_score_model(x, info, w, row_block=None):
    """Forward of Graph_Score_Model.  x: (N, N, 3), info: (N, N), w: (3,) -> (N,) f32."""
    n = info.shape[0]

    # Linear(3->1, bias=False) as a tiny einsum in the *input dtype* (no forced
    # f32 upcast).  allow_input_fusion on operand 0 lets XLA fuse this size-3
    # reduction into the Pallas input DMA (no standalone score_pre HBM pass).
    score_pre = jnp.einsum("ijk,k->ij", x, w.astype(x.dtype))     # (N, N)

    budget, vmem_limit, tr_cap = _vmem_budgets()

    if row_block is not None:
        tr = int(row_block)
        # Round user tile to a multiple of 8 (sublane rule) unless it covers all rows.
        tr = n if tr >= n else max(8, (tr // 8) * 8)
    else:
        tr = _pick_row_tile(n, score_pre.dtype.itemsize, info.dtype.itemsize,
                            budget, tr_cap)
        # Guarantee >=2 grid steps when possible: lets the "parallel" row axis
        # shard across v7x's two TensorCores and enables DMA/compute overlap.
        if tr >= n and n >= 16:
            tr = max(8, (pl.cdiv(n, 2) // 8) * 8)

    grid = (pl.cdiv(n, tr),)

    out = pl.pallas_call(
        _graph_softmax_agg_kernel,
        out_shape=jax.ShapeDtypeStruct((n, 1), jnp.float32),
        grid=grid,
        in_specs=[
            pl.BlockSpec((tr, n), lambda i: (i, 0)),              # score row block
            pl.BlockSpec((tr, n), lambda i: (i, 0)),              # info row block
        ],
        out_specs=pl.BlockSpec((tr, 1), lambda i: (i, 0)),
        compiler_params=pltpu.CompilerParams(
            dimension_semantics=("parallel",),                    # megacore-shardable
            vmem_limit_bytes=vmem_limit,
            allow_input_fusion=[True, False],                     # fuse 3->1 einsum into operand 0
        ),
    )(score_pre, info)
    return out[:, 0]


def _reference(x, info, w):
    # Mirrors the wrapper's dtype handling: einsum in the input dtype, then f32.
    score = jnp.einsum("ijk,k->ij", x, w.astype(x.dtype)).astype(jnp.float32)
    n = score.shape[0]
    score = jnp.where(jnp.eye(n, dtype=bool), -jnp.inf, score)
    attn = jax.nn.softmax(score, axis=-1)
    return jnp.sum(attn * info.astype(jnp.float32), axis=1)


if __name__ == "__main__":
    key = jax.random.PRNGKey(0)
    kx, ki = jax.random.split(key)

    N = 64
    x = jax.random.normal(kx, (N, N, 3), dtype=jnp.float32)
    info = jax.random.normal(ki, (N, N), dtype=jnp.float32)
    # Deterministic parameter init, matching the module's __init__: [1, -1, 1].
    w = jnp.array([1.0, -1.0, 1.0], dtype=jnp.float32)

    ref = _reference(x, info, w)

    # Explicit small row block -> 4 grid steps.
    out_tiled = jax.block_until_ready(graph_score_model(x, info, w, row_block=16))
    np.testing.assert_allclose(np.asarray(out_tiled), np.asarray(ref),
                               rtol=1e-4, atol=1e-4)

    # Non-multiple-of-8 user row block (rounded to 8 internally).
    out_rb10 = jax.block_until_ready(graph_score_model(x, info, w, row_block=10))
    np.testing.assert_allclose(np.asarray(out_rb10), np.asarray(ref),
                               rtol=1e-4, atol=1e-4)

    # Auto tile size (>=2 grid steps so both v7x TensorCores can be used).
    out_auto = jax.block_until_ready(graph_score_model(x, info, w))
    np.testing.assert_allclose(np.asarray(out_auto), np.asarray(ref),
                               rtol=1e-4, atol=1e-4)

    # Partial last row block (N not a multiple of the auto tile).
    N2 = 44
    kx2, ki2 = jax.random.split(jax.random.PRNGKey(0), 2)
    x2 = jax.random.normal(kx2, (N2, N2, 3), dtype=jnp.float32)
    info2 = jax.random.normal(ki2, (N2, N2), dtype=jnp.float32)
    out2 = jax.block_until_ready(graph_score_model(x2, info2, w))
    np.testing.assert_allclose(np.asarray(out2), np.asarray(_reference(x2, info2, w)),
                               rtol=1e-4, atol=1e-4)

    # bf16 inputs: no wrapper upcast, the kernel streams bf16 and upcasts in-VMEM.
    x_bf = x.astype(jnp.bfloat16)
    info_bf = info.astype(jnp.bfloat16)
    out_bf = jax.block_until_ready(graph_score_model(x_bf, info_bf, w))
    np.testing.assert_allclose(np.asarray(out_bf),
                               np.asarray(_reference(x_bf, info_bf, w)),
                               rtol=2e-3, atol=2e-3)

    print("KERNEL_OK")
</pallas_src>

<mosaic_0001>
module attributes {stable_mosaic.version = 11 : i64} {
  func.func @_graph_softmax_agg_kernel(%arg0: i32, %arg1: memref<16x64xf32, #tpu.memory_space<vmem>>, %arg2: memref<16x64xf32, #tpu.memory_space<vmem>>, %arg3: memref<16x1xf32, #tpu.memory_space<vmem>>) attributes {dimension_semantics = [#tpu.dimension_semantics<parallel>], iteration_bounds = array<i64: 4>, scalar_prefetch = 0 : i64, scratch_operands = 0 : i64, tpu.core_type = #tpu.core_type<tc>, window_params = [{transform_indices = @transform_0, window_bounds = array<i64: 16, 64>}, {transform_indices = @transform_1, window_bounds = array<i64: 16, 64>}, {transform_indices = @transform_2, window_bounds = array<i64: 16, 1>}]} {
    %c0 = arith.constant 0 : index
    %c0_0 = arith.constant 0 : index
    %0 = vector.load %arg1[%c0, %c0_0] : memref<16x64xf32, #tpu.memory_space<vmem>>, vector<16x64xf32>
    %1 = tpu.iota {dimensions = array<i32: 1>} : vector<16x64xi32>
    %2 = tpu.iota {dimensions = array<i32: 0>} : vector<16x1xi32>
    %c16_i32 = arith.constant 16 : i32
    %3 = arith.muli %arg0, %c16_i32 : i32
    %4 = vector.broadcast %3 : i32 to vector<16x1xi32>
    %5 = arith.addi %2, %4 : vector<16x1xi32>
    %6 = vector.broadcast %5 : vector<16x1xi32> to vector<16x64xi32>
    %7 = arith.cmpi eq, %1, %6 : vector<16x64xi32>
    %cst = arith.constant 0xFF800000 : f32
    %8 = vector.broadcast %cst : f32 to vector<16x64xf32>
    %9 = arith.select %7, %8, %0 : vector<16x64xi1>, vector<16x64xf32>
    %cst_1 = arith.constant dense<0xFF800000> : vector<16xf32>
    %10 = vector.multi_reduction <maximumf>, %9, %cst_1 [1] : vector<16x64xf32> to vector<16xf32>
    %11 = vector.shape_cast %10 : vector<16xf32> to vector<16x1xf32>
    %12 = vector.broadcast %11 : vector<16x1xf32> to vector<16x64xf32>
    %13 = arith.subf %9, %12 : vector<16x64xf32>
    %14 = math.exp %13 : vector<16x64xf32>
    %cst_2 = arith.constant dense<0.000000e+00> : vector<16xf32>
    %15 = vector.multi_reduction <add>, %14, %cst_2 [1] : vector<16x64xf32> to vector<16xf32>
    %16 = vector.shape_cast %15 : vector<16xf32> to vector<16x1xf32>
    %c0_3 = arith.constant 0 : index
    %c0_4 = arith.constant 0 : index
    %17 = vector.load %arg2[%c0_3, %c0_4] : memref<16x64xf32, #tpu.memory_space<vmem>>, vector<16x64xf32>
    %18 = arith.mulf %14, %17 : vector<16x64xf32>
    %cst_5 = arith.constant dense<0.000000e+00> : vector<16xf32>
    %19 = vector.multi_reduction <add>, %18, %cst_5 [1] : vector<16x64xf32> to vector<16xf32>
    %20 = vector.shape_cast %19 : vector<16xf32> to vector<16x1xf32>
    %21 = tpu.reciprocal %16 {approx = true} : vector<16x1xf32> -> vector<16x1xf32>
    %22 = arith.mulf %16, %21 : vector<16x1xf32>
    %cst_6 = arith.constant 2.000000e+00 : f32
    %23 = vector.broadcast %cst_6 : f32 to vector<16x1xf32>
    %24 = arith.subf %23, %22 : vector<16x1xf32>
    %25 = arith.mulf %21, %24 : vector<16x1xf32>
    %26 = arith.mulf %20, %25 : vector<16x1xf32>
    %c0_7 = arith.constant 0 : index
    %c0_8 = arith.constant 0 : index
    %27 = vector.load %arg3[%c0_7, %c0_8] : memref<16x1xf32, #tpu.memory_space<vmem>>, vector<16x1xf32>
    tpu.vector_store %arg3[%c0_7, %c0_8], %26 {strides = array<i32>} : memref<16x1xf32, #tpu.memory_space<vmem>>, vector<16x1xf32>,
    return
  }
  func.func @transform_0(%arg0: i32) -> (i32, i32) {
    %c0_i32 = arith.constant 0 : i32
    %c0_i32_0 = arith.constant 0 : i32
    return %arg0, %c0_i32 : i32, i32
  }
  func.func @transform_1(%arg0: i32) -> (i32, i32) {
    %c0_i32 = arith.constant 0 : i32
    %c0_i32_0 = arith.constant 0 : i32
    return %arg0, %c0_i32 : i32, i32
  }
  func.func @transform_2(%arg0: i32) -> (i32, i32) {
    %c0_i32 = arith.constant 0 : i32
    %c0_i32_0 = arith.constant 0 : i32
    return %arg0, %c0_i32 : i32, i32
  }
}

</mosaic_0001>

<llo_original>
// kernel: tpu_custom_call.1
$region0: #{tpu_custom_call.1}
  #allocation0 [shape = 'u32[]', space=smem, size = 0x4, offset = 0x4, fixed_abs, tag = 'smem constant byte address 0x4 - core index']
  #allocation1 [shape = 'u32[144,128]{1,0:T(1,128)}', space=vmem, size = 0x12000, scoped, tag = 'internal scratch']
  %s0 = inlined_call_operand.hbm [shape: f32[64,64], index: 0, kind: input, shape index: {}]
  %s1 = inlined_call_operand.hbm [shape: f32[64,64], index: 1, kind: input, shape index: {}]
  %s2 = inlined_call_operand.vmem [shape: f32[64,1], index: 2, kind: output, shape index: {}]
  %s3 = sld [smem:[#allocation0]]
  $region49: #{tpu_custom_call.1} parent=0
    _
  %s5 = ssub.s32 1, %s3
  %s6 = scalar_select 0, %s5, %s3
  $region1: #{tpu_custom_call.1} parent=0
    #allocation2 [shape = 'u8[16384]{0}', space=vmem, size = 0x4000, scoped, tag = 'input window, operand 0']
    #allocation3 [shape = 's32[2]{0}', space=sflag, size = 0x8, scoped, tag = 'scoped memory for tpu_custom_call.1']
    #allocation4 [shape = 'u8[16384]{0}', space=vmem, size = 0x4000, scoped, tag = 'input window, operand 1']
    #allocation5 [shape = 's32[2]{0}', space=sflag, size = 0x8, scoped, tag = 'scoped memory for tpu_custom_call.1']
    %7 = vsyncpa [#allocation3], 0
    %s8 = scalar_lea.sflag [#allocation3], 1
    %9 = vsyncpa %s8, 0
    %10 = vsyncpa [#allocation5], 0
    %s11 = scalar_lea.sflag [#allocation5], 1
    %12 = vsyncpa %s11, 0
    loop: start=0, step=1, limit=6
    $region2: #{tpu_custom_call.1} parent=1 // loop_pre_header
      _
    $region3: #{tpu_custom_call.1} parent=1 // loop_header
      %s14 = sphi 0, %s18
      %p15 = scmp.ge.s32.totalorder %s14, 6
      %s24 = sphi 0, %s26
      %s27 = sphi 0, %s24
      %s28 = sphi 0, %s27
      %s44 = sphi 0, %s28
      %s50 = sphi 0, %s52
      %s53 = sphi 0, %s50
      %s54 = sphi 0, %s53
      %s70 = sphi 0, %s54
      %s76 = sphi 0, %s78
      %s79 = sphi 0, %s76
      %s80 = sphi 0, %s79
      %s96 = sphi 0, %s80
    $region4: #{tpu_custom_call.1} parent=1 // loop_header_branch
      %17 = sbr.rel (%p15) target = $region8
    $region5: #{tpu_custom_call.1} parent=1 // loop_body
      %s19 = ssub.s32 %s14, 1
      %s20 = ssub.s32 %s14, 2
      %s21 = sadd.s32 %s14, 1
      %s22 = ssub.s32 %s14, %s21
      %p23 = scmp.eq.s32.totalorder %s22, 0
      %s25 = sadd.s32 %s24, 1
      %s26 = scalar_select %p23, %s24, %s25
      %p29 = pneg %p23
      %p30 = scmp.eq.s32.totalorder %s14, 3
      %p31 = por %p29, %p30
      %p32 = scmp.ne.s32.totalorder %s24, %s27
      %p33 = scmp.eq.s32.totalorder %s14, 0
      %p34 = por %p32, %p33
      %p35 = scmp.ne.s32.totalorder %s24, %s27
      %p36 = scmp.eq.s32.totalorder %s19, 3
      %p37 = por %p35, %p36
      %p38 = scmp.ne.s32.totalorder %s27, %s28
      %p39 = scmp.eq.s32.totalorder %s19, 0
      %p40 = por %p38, %p39
      %p41 = scmp.ne.s32.totalorder %s27, %s28
      %p42 = scmp.eq.s32.totalorder %s20, 3
      %p43 = por %p41, %p42
      %p45 = scmp.ne.s32.totalorder %s28, %s44
      %p46 = scmp.eq.s32.totalorder %s20, 0
      %p47 = por %p45, %p46
      %s48 = ssub.s32 %s14, %s21
      %p49 = scmp.eq.s32.totalorder %s48, 0
      %s51 = sadd.s32 %s50, 1
      %s52 = scalar_select %p49, %s50, %s51
      %p55 = pneg %p49
      %p56 = scmp.eq.s32.totalorder %s14, 3
      %p57 = por %p55, %p56
      %p58 = scmp.ne.s32.totalorder %s50, %s53
      %p59 = scmp.eq.s32.totalorder %s14, 0
      %p60 = por %p58, %p59
      %p61 = scmp.ne.s32.totalorder %s50, %s53
      %p62 = scmp.eq.s32.totalorder %s19, 3
      %p63 = por %p61, %p62
      %p64 = scmp.ne.s32.totalorder %s53, %s54
      %p65 = scmp.eq.s32.totalorder %s19, 0
      %p66 = por %p64, %p65
      %p67 = scmp.ne.s32.totalorder %s53, %s54
      %p68 = scmp.eq.s32.totalorder %s20, 3
      %p69 = por %p67, %p68
      %p71 = scmp.ne.s32.totalorder %s54, %s70
      %p72 = scmp.eq.s32.totalorder %s20, 0
      %p73 = por %p71, %p72
      %s74 = ssub.s32 %s14, %s21
      %p75 = scmp.eq.s32.totalorder %s74, 0
      %s77 = sadd.s32 %s76, 1
      %s78 = scalar_select %p75, %s76, %s77
      %p81 = pneg %p75
      %p82 = scmp.eq.s32.totalorder %s14, 3
      %p83 = por %p81, %p82
      %p84 = scmp.ne.s32.totalorder %s76, %s79
      %p85 = scmp.eq.s32.totalorder %s14, 0
      %p86 = por %p84, %p85
      %p87 = scmp.ne.s32.totalorder %s76, %s79
      %p88 = scmp.eq.s32.totalorder %s19, 3
      %p89 = por %p87, %p88
      %p90 = scmp.ne.s32.totalorder %s79, %s80
      %p91 = scmp.eq.s32.totalorder %s19, 0
      %p92 = por %p90, %p91
      %p93 = scmp.ne.s32.totalorder %s79, %s80
      %p94 = scmp.eq.s32.totalorder %s20, 3
      %p95 = por %p93, %p94
      %p97 = scmp.ne.s32.totalorder %s80, %s96
      %p98 = scmp.eq.s32.totalorder %s20, 0
      %p99 = por %p97, %p98
      %p100 = scmp.le.s32.totalorder 1, %s14
      %p101 = scmp.lt.s32.totalorder %s14, 5
      %p102 = pnand %p100, %p101
      %p103 = pneg %p102
      // Predicated region
      $region9: #{tpu_custom_call.1} parent=5 // pred_check
        _
      $region10: #{tpu_custom_call.1} parent=5 // pred_check_branch
        %105 = sbr.rel (%p102) target = $region12
      $region11: #{tpu_custom_call.1} parent=5 // pred_region
        %s106 = ssub.s32 %s14, 1
      $region12: #{tpu_custom_call.1} parent=5 // pred_fallthru
        _
      %p107 = scmp.lt.s32.totalorder %s14, 4
      // Predicated region
      $region13: #{tpu_custom_call.1} parent=5 // pred_check
        %p108 = pneg %p107
      $region14: #{tpu_custom_call.1} parent=5 // pred_check_branch
        %110 = sbr.rel (%p108) target = $region16
      $region15: #{tpu_custom_call.1} parent=5 // pred_region
        // Predicated region
        $region17: #{tpu_custom_call.1} parent=15 // pred_check
          %p111 = pneg %p34
        $region18: #{tpu_custom_call.1} parent=15 // pred_check_branch
          %113 = sbr.rel (%p111) target = $region20
        $region19: #{tpu_custom_call.1} parent=15 // pred_region
          %s114 = sand.u32 %s24, 1
          %s115 = scalar_lea.sflag [#allocation3], %s114
          %s116 = sand.u32 %s24, 1
          %s117 = smul.addr %s116, 16
          %s118 = scalar_lea.vmem [#allocation2], %s117
          %s119 = smul.u32 2, %s14
          %s121 = ssub.s32 256, 256
          %122 = vsyncadd %s115, %s121
          %s123 = smul.addr %s119, 128
          %s124 = scalar_lea.hbm %s0, %s123
          %s125 = sshll.u32 %s118, 4
          %s126 = int_to_ptr.vmem [resolvable:$true] %s125
          %131 = dma.hbm_to_vmem [thread:$0]  %s124, 256, %s126, %s115, 128, 128, 8
        $region20: #{tpu_custom_call.1} parent=15 // pred_fallthru
          _
        // Predicated region
        $region21: #{tpu_custom_call.1} parent=15 // pred_check
          %p132 = pneg %p60
        $region22: #{tpu_custom_call.1} parent=15 // pred_check_branch
          %134 = sbr.rel (%p132) target = $region24
        $region23: #{tpu_custom_call.1} parent=15 // pred_region
          %s135 = sand.u32 %s50, 1
          %s136 = scalar_lea.sflag [#allocation5], %s135
          %s137 = sand.u32 %s50, 1
          %s138 = smul.addr %s137, 16
          %s139 = scalar_lea.vmem [#allocation4], %s138
          %s140 = smul.u32 2, %s14
          %s142 = ssub.s32 256, 256
          %143 = vsyncadd %s136, %s142
          %s144 = smul.addr %s140, 128
          %s145 = scalar_lea.hbm %s1, %s144
          %s146 = sshll.u32 %s139, 4
          %s147 = int_to_ptr.vmem [resolvable:$true] %s146
          %152 = dma.hbm_to_vmem [thread:$0]  %s145, 256, %s147, %s136, 128, 128, 8
        $region24: #{tpu_custom_call.1} parent=15 // pred_fallthru
          _
      $region16: #{tpu_custom_call.1} parent=5 // pred_fallthru
        _
      %p153 = scmp.le.s32.totalorder 1, %s14
      %p154 = scmp.lt.s32.totalorder %s14, 5
      %p155 = pnand %p153, %p154
      %p156 = pneg %p155
      // Predicated region
      $region25: #{tpu_custom_call.1} parent=5 // pred_check
        _
      $region26: #{tpu_custom_call.1} parent=5 // pred_check_branch
        %158 = sbr.rel (%p155) target = $region28
      $region27: #{tpu_custom_call.1} parent=5 // pred_region
        %s159 = ssub.s32 %s14, 1
        %s160 = sand.u32 %s27, 1
        %s161 = scalar_lea.sflag [#allocation3], %s160
        %s162 = sand.u32 %s27, 1
        %s163 = smul.addr %s162, 16
        %s164 = scalar_lea.vmem [#allocation2], %s163
        // Predicated region
        $region29: #{tpu_custom_call.1} parent=27 // pred_check
          %p165 = pneg %p40
        $region30: #{tpu_custom_call.1} parent=27 // pred_check_branch
          %167 = sbr.rel (%p165) target = $region32
        $region31: #{tpu_custom_call.1} parent=27 // pred_region
          %168 = dma.done %s161, 256
        $region32: #{tpu_custom_call.1} parent=27 // pred_fallthru
          _
        %s169 = sand.u32 %s53, 1
        %s170 = scalar_lea.sflag [#allocation5], %s169
        %s171 = sand.u32 %s53, 1
        %s172 = smul.addr %s171, 16
        %s173 = scalar_lea.vmem [#allocation4], %s172
        // Predicated region
        $region33: #{tpu_custom_call.1} parent=27 // pred_check
          %p174 = pneg %p66
        $region34: #{tpu_custom_call.1} parent=27 // pred_check_branch
          %176 = sbr.rel (%p174) target = $region36
        $region35: #{tpu_custom_call.1} parent=27 // pred_region
          %177 = dma.done %s170, 256
        $region36: #{tpu_custom_call.1} parent=27 // pred_fallthru
          _
        %s178 = sand.u32 %s27, 1
        %s179 = scalar_lea.sflag [#allocation3], %s178
        %s180 = sand.u32 %s27, 1
        %s181 = smul.addr %s180, 16
        %s182 = scalar_lea.vmem [#allocation2], %s181
        %p183 = pneg %p40
        %p184 = pneg %p37
        %s185 = sand.u32 %s53, 1
        %s186 = scalar_lea.sflag [#allocation5], %s185
        %s187 = sand.u32 %s53, 1
        %s188 = smul.addr %s187, 16
        %s189 = scalar_lea.vmem [#allocation4], %s188
        %p190 = pneg %p66
        %p191 = pneg %p63
        %p192 = pneg %p92
        %p193 = pneg %p89
        %s194 = smul.u32 2, %s19
        %p195 = scmp.lt.s32.totalorder %s194, 7
        %s196 = scalar_select %p195, %s194, 7
        %s197 = smul.addr %s196, 8
        %s198 = scalar_lea.vmem %s2, %s197
        %s199 = smul.u32 2, %s19
        %s200 = smul.u32 2, %s19
        %s201 = smul.u32 2, %s19
        %p202 = scmp.lt.s32.totalorder %s201, 7
        %s203 = scalar_select %p202, %s201, 7
        %s204 = smul.addr %s203, 8
        %s205 = scalar_lea.vmem %s2, %s204
        %s206 = smul.u32 2, %s19
        %v207 = vld [vmem:[%s164] sm:$0xff]
        %v208 = vld [vmem:[%s164 + $0x8] sm:$0xff]
        %v209 = vlaneseq
        %v210 = vand.u32 %v209, 127
        %v211 = vlaneseq
        %v212 = vshrl.u32 %v211, 7
        %v213 = vadd.s32 %v212, 8
        %s214 = smul.u32 %s19, 16
        %v215 = vstv %s214
        %v216 = vadd.s32 %v212, %v215
        %v217 = vadd.s32 %v213, %v215
        %vm218 = vcmp.eq.s32.totalorder %v210, %v216
        %vm219 = vcmp.eq.s32.totalorder %v210, %v217
        %v220 = vsel %vm218, -inf, %v207
        %v221 = vsel %vm219, -inf, %v208
        %vm222 = vcmask 523264
        %v223 = vsel %vm222, %v220, -inf
        %224 = vmax.xlane.f32.xlu0 %v223
        %v225 = vpop.xlane.xlu0 %224
        %v226 = vsel %vm222, %v221, -inf
        %227 = vmax.xlane.f32.xlu0 %v226
        %v228 = vpop.xlane.xlu0 %227
        %v229 = vsub.f32 %v220, %v225
        %v230 = vsub.f32 %v221, %v228
        %v231 = vmul.f32 %v229, 1.442695
        %v232 = vpow.pop %v231
        %v233 = vmul.f32 %v230, 1.442695
        %v234 = vpow.pop %v233
        %v235 = vsel %vm222, %v232, 0.0
        %236 = vadd.xlane.f32.xlu0 %v235
        %v237 = vpop.xlane.xlu0 %236
        %v238 = vsel %vm222, %v234, 0.0
        %239 = vadd.xlane.f32.xlu0 %v238
        %v240 = vpop.xlane.xlu0 %239
        %v241 = vld [vmem:[%s173] sm:$0xff]
        %v242 = vld [vmem:[%s173 + $0x8] sm:$0xff]
        %v243 = vmul.f32 %v232, %v241
        %v244 = vmul.f32 %v234, %v242
        %v245 = vsel %vm222, %v243, 0.0
        %246 = vadd.xlane.f32.xlu0 %v245
        %v247 = vpop.xlane.xlu0 %246
        %v248 = vsel %vm222, %v244, 0.0
        %249 = vadd.xlane.f32.xlu0 %v248
        %v250 = vpop.xlane.xlu0 %249
        %v251 = vrcp.pop %v237
        %v252 = vrcp.pop %v240
        %v253 = vmul.f32 %v237, %v251
        %v254 = vmul.f32 %v240, %v252
        %v255 = vsub.f32 2.0, %v253
        %v256 = vsub.f32 2.0, %v254
        %v257 = vmul.f32 %v251, %v255
        %v258 = vmul.f32 %v252, %v256
        %v259 = vmul.f32 %v247, %v257
        %v260 = vmul.f32 %v250, %v258
        %vm261 = vcmask 7168
        %262 = vst.msk [vmem:[%s205] sm:$0xff] %vm261, %v259
        %263 = vst.msk [vmem:[%s205 + $0x8] sm:$0xff] %vm261, %v260
        %s264 = smul.u32 2, %s19
        %p265 = scmp.lt.s32.totalorder %s264, 7
        %s266 = scalar_select %p265, %s264, 7
        %s267 = smul.addr %s266, 8
        %s268 = scalar_lea.vmem %s2, %s267
        // Predicated region
        $region37: #{tpu_custom_call.1} parent=27 // pred_check
          %p269 = pneg %p89
        $region38: #{tpu_custom_call.1} parent=27 // pred_check_branch
          %271 = sbr.rel (%p269) target = $region40
        $region39: #{tpu_custom_call.1} parent=27 // pred_region
          %s272 = smul.u32 2, %s19
        $region40: #{tpu_custom_call.1} parent=27 // pred_fallthru
          _
      $region28: #{tpu_custom_call.1} parent=5 // pred_fallthru
        _
      %p273 = scmp.le.s32.totalorder 2, %s14
      // Predicated region
      $region41: #{tpu_custom_call.1} parent=5 // pred_check
        %p274 = pneg %p273
      $region42: #{tpu_custom_call.1} parent=5 // pred_check_branch
        %276 = sbr.rel (%p274) target = $region44
      $region43: #{tpu_custom_call.1} parent=5 // pred_region
        %s277 = ssub.s32 %s14, 2
        // Predicated region
        $region45: #{tpu_custom_call.1} parent=43 // pred_check
          %p278 = pneg %p95
        $region46: #{tpu_custom_call.1} parent=43 // pred_check_branch
          %280 = sbr.rel (%p278) target = $region48
        $region47: #{tpu_custom_call.1} parent=43 // pred_region
          %s281 = smul.u32 2, %s20
          %p282 = scmp.lt.s32.totalorder %s281, 7
          %s283 = scalar_select %p282, %s281, 7
          %s284 = smul.addr %s283, 8
          %s285 = scalar_lea.vmem %s2, %s284
        $region48: #{tpu_custom_call.1} parent=43 // pred_fallthru
          _
      $region44: #{tpu_custom_call.1} parent=5 // pred_fallthru
        _
    $region6: #{tpu_custom_call.1} parent=1 // loop_footer
      %s18 = sadd.s32 1, %s14
    $region7: #{tpu_custom_call.1} parent=1 // loop_footer_branch
      %13 = sbr.rel target = $region3
    $region8: #{tpu_custom_call.1} parent=1 // loop_exit
      _
    %286 = vsyncpa [#allocation3], 1
    %s287 = scalar_lea.sflag [#allocation3], 1
    %288 = vsyncpa %s287, 1
    %289 = vsyncpa [#allocation5], 1
    %s290 = scalar_lea.sflag [#allocation5], 1
    %291 = vsyncpa %s290, 1

</llo_original>
